<compile_context>
chip_gen: v6e
topology: v6e:2x2x1
jax: 0.10.0
libtpu: 0.0.40
codegen_flags: <defaults>
</compile_context>

<pallas_src>
import functools

import jax
import jax.numpy as jnp
from jax import lax
from jax.experimental import pallas as pl
from jax.experimental.pallas import tpu as pltpu

_LANES = 128


def _round_up(x, m):
    return ((x + m - 1) // m) * m


def _device_caps():
    """(max_tile_rows, num_tensorcores) for the current TPU generation."""
    kind = ""
    try:
        kind = jax.devices()[0].device_kind.lower()
    except Exception:  # pragma: no cover - defensive fallback
        pass
    if "v7" in kind:
        return 4096, 2          # 64 MiB VMEM/TC, 2 TCs -> split the stream
    if "v6" in kind:
        return 4096, 1          # 32 MiB scoped default takes 4096-row tiles easily
    if "v5" in kind:
        return 2048, 1          # stay comfortably inside v5e's 16 MiB scoped VMEM
    return 2048, 1              # unknown: conservative, fits every generation


def _msle_kernel(yh_ref, y_ref, out_ref, acc_ref, *,
                 rows, num_blocks, steps, tile_rows, masked, mask_from_blk):
    s = pl.program_id(1)  # sequential ("arbitrary") axis, innermost

    @pl.when(s == 0)
    def _():
        acc_ref[...] = jnp.zeros_like(acc_ref)

    # Upcast in-kernel (keeps HBM traffic at the input's native width).
    yh = yh_ref[...].astype(jnp.float32)
    yy = y_ref[...].astype(jnp.float32)
    d = jnp.log(yh) - jnp.log(yy)
    sq = d * d

    if masked:
        p = pl.program_id(0)
        logical_blk = p * steps + s
        needs_mask = logical_blk >= mask_from_blk

        # Hot path: interior blocks never touch the iota / compare / select.
        @pl.when(jnp.logical_not(needs_mask))
        def _():
            acc_ref[...] += sq

        # Cold path: ragged tail block and/or clamped duplicate blocks.
        # Row-index-only mask; jnp.where is a select so NaN/Inf from log of
        # out-of-bounds garbage does not propagate.
        @pl.when(needs_mask)
        def _():
            blk = jnp.minimum(logical_blk, num_blocks - 1)  # matches index_map clamp
            row0 = blk * tile_rows
            row = lax.broadcasted_iota(jnp.int32, (tile_rows, _LANES), 0)
            valid = ((row0 + row) < rows) & (logical_blk < num_blocks)
            acc_ref[...] += jnp.where(valid, sq, 0.0)
    else:
        acc_ref[...] += sq

    @pl.when(s == pl.num_programs(1) - 1)
    def _():
        out_ref[0, 0] = jnp.sum(acc_ref[...])


def _msle_sum_aligned(yh2d, yy2d):
    """Sum of (log(yh)-log(y))**2 over a (rows, 128) slab, via the Pallas kernel."""
    rows = yh2d.shape[0]

    max_tile_rows, num_tc = _device_caps()
    tile_rows = min(max_tile_rows, _round_up(rows, 16))
    num_blocks = pl.cdiv(rows, tile_rows)

    # Split the stream across TensorCores only where that actually exists (v7x).
    num_parallel = 2 if (num_tc >= 2 and num_blocks >= 2) else 1
    steps = pl.cdiv(num_blocks, num_parallel)

    tail_ragged = (rows % tile_rows) != 0
    clamped = (num_parallel * steps) != num_blocks
    masked = tail_ragged or clamped
    mask_from_blk = (num_blocks - 1) if tail_ragged else num_blocks

    if not clamped:
        def in_map(p, s):
            return (p * steps + s, 0)
    else:
        def in_map(p, s):
            # Clamp fully out-of-range logical blocks onto the last real block;
            # the kernel masks their contribution to zero.
            return (jnp.minimum(p * steps + s, num_blocks - 1), 0)

    kernel = functools.partial(
        _msle_kernel,
        rows=rows,
        num_blocks=num_blocks,
        steps=steps,
        tile_rows=tile_rows,
        masked=masked,
        mask_from_blk=mask_from_blk,
    )

    partials = pl.pallas_call(
        kernel,
        out_shape=jax.ShapeDtypeStruct((num_parallel, 1), jnp.float32),
        grid_spec=pltpu.PrefetchScalarGridSpec(
            num_scalar_prefetch=0,
            grid=(num_parallel, steps),
            in_specs=[
                pl.BlockSpec((tile_rows, _LANES), in_map),
                pl.BlockSpec((tile_rows, _LANES), in_map),
            ],
            out_specs=pl.BlockSpec(
                (1, 1), lambda p, s: (p, 0), memory_space=pltpu.SMEM
            ),
            scratch_shapes=[pltpu.VMEM((tile_rows, _LANES), jnp.float32)],
        ),
        compiler_params=pltpu.CompilerParams(
            dimension_semantics=("parallel", "arbitrary"),
        ),
    )(yh2d, yy2d)

    return jnp.sum(partials)


def msle_loss(y_hat, y):
    assert y_hat.shape == y.shape, (y_hat.shape, y.shape)
    n_elems = int(y_hat.size)
    assert n_elems > 0

    yh = y_hat.reshape(-1)
    yy = y.reshape(-1)

    aligned = (n_elems // _LANES) * _LANES
    tail = n_elems - aligned

    total = jnp.float32(0.0)

    if tail:
        # Tiny (<128 element) ragged tail: plain jnp in the wrapper. Avoids
        # re-writing both full arrays to HBM just to lane-pad them.
        dt = (jnp.log(yh[aligned:].astype(jnp.float32))
              - jnp.log(yy[aligned:].astype(jnp.float32)))
        total = total + jnp.sum(dt * dt)

    if aligned:
        rows = aligned // _LANES
        yh2d = yh[:aligned].reshape(rows, _LANES)
        yy2d = yy[:aligned].reshape(rows, _LANES)
        total = total + _msle_sum_aligned(yh2d, yy2d)

    return total / jnp.float32(n_elems)


def _ref_msle(y_hat, y):
    yh = y_hat.astype(jnp.float32)
    yy = y.astype(jnp.float32)
    return jnp.mean((jnp.log(yh) - jnp.log(yy)) ** 2)


if __name__ == "__main__":
    key = jax.random.PRNGKey(0)
    k1, k2, k3, k4, k5, k6 = jax.random.split(key, 6)

    # Main test: NCHW-style f32, strictly-positive inputs (log requires > 0).
    y_hat = jax.random.uniform(k1, (2, 4, 16, 16), jnp.float32, 0.1, 2.0)
    y = jax.random.uniform(k2, (2, 4, 16, 16), jnp.float32, 0.1, 2.0)
    loss = msle_loss(y_hat, y)
    jax.block_until_ready(loss)
    ref = _ref_msle(y_hat, y)
    assert jnp.allclose(loss, ref, rtol=1e-5, atol=1e-6), (loss, ref)

    # bf16 inputs: exercises the in-kernel upcast path (HBM traffic stays 16-bit).
    yh16 = y_hat.astype(jnp.bfloat16)
    y16 = y.astype(jnp.bfloat16)
    loss_bf16 = msle_loss(yh16, y16)
    jax.block_until_ready(loss_bf16)
    ref_bf16 = _ref_msle(yh16, y16)
    assert jnp.allclose(loss_bf16, ref_bf16, rtol=1e-4, atol=1e-5), (loss_bf16, ref_bf16)

    # Partially ragged input (255 elems): 128-aligned prefix goes through the
    # kernel (exercises the row-mask cold path), the 127-element tail is jnp.
    a = jax.random.uniform(k3, (3, 5, 17), jnp.float32, 0.1, 2.0)
    b = jax.random.uniform(k4, (3, 5, 17), jnp.float32, 0.1, 2.0)
    loss2 = msle_loss(a, b)
    jax.block_until_ready(loss2)
    ref2 = _ref_msle(a, b)
    assert jnp.allclose(loss2, ref2, rtol=1e-5, atol=1e-6), (loss2, ref2)

    # Fully sub-lane input (105 elems < 128): pure jnp fallback path.
    c = jax.random.uniform(k5, (3, 5, 7), jnp.float32, 0.1, 2.0)
    d = jax.random.uniform(k6, (3, 5, 7), jnp.float32, 0.1, 2.0)
    loss3 = msle_loss(c, d)
    jax.block_until_ready(loss3)
    ref3 = _ref_msle(c, d)
    assert jnp.allclose(loss3, ref3, rtol=1e-5, atol=1e-6), (loss3, ref3)

    print("KERNEL_OK")
</pallas_src>

<mosaic_0001>
module attributes {stable_mosaic.version = 11 : i64} {
  func.func @_msle_kernel(%arg0: i32, %arg1: i32, %arg2: memref<16x128xf32, #tpu.memory_space<vmem>>, %arg3: memref<16x128xf32, #tpu.memory_space<vmem>>, %arg4: memref<1x1xf32, #tpu.memory_space<smem>>, %arg5: memref<16x128xf32, #tpu.memory_space<vmem>>) attributes {dimension_semantics = [#tpu.dimension_semantics<parallel>, #tpu.dimension_semantics<arbitrary>], iteration_bounds = array<i64: 1, 1>, scalar_prefetch = 0 : i64, scratch_operands = 1 : i64, tpu.core_type = #tpu.core_type<tc>, window_params = [{transform_indices = @transform_0, window_bounds = array<i64: 16, 128>}, {transform_indices = @transform_1, window_bounds = array<i64: 16, 128>}, {transform_indices = @transform_2, window_bounds = array<i64: 1, 1>}]} {
    %c0_i32 = arith.constant 0 : i32
    %0 = arith.cmpi eq, %arg1, %c0_i32 : i32
    %1 = arith.extui %0 : i1 to i32
    %c0_i32_0 = arith.constant 0 : i32
    %2 = arith.cmpi ne, %1, %c0_i32_0 : i32
    scf.if %2 {
      %cst = arith.constant 0.000000e+00 : f32
      %15 = vector.broadcast %cst : f32 to vector<16x128xf32>
      %c0_10 = arith.constant 0 : index
      %c0_11 = arith.constant 0 : index
      %16 = vector.load %arg5[%c0_10, %c0_11] : memref<16x128xf32, #tpu.memory_space<vmem>>, vector<16x128xf32>
      tpu.vector_store %arg5[%c0_10, %c0_11], %15 {strides = array<i32>} : memref<16x128xf32, #tpu.memory_space<vmem>>, vector<16x128xf32>,
    } else {
    }
    %c0 = arith.constant 0 : index
    %c0_1 = arith.constant 0 : index
    %3 = vector.load %arg2[%c0, %c0_1] : memref<16x128xf32, #tpu.memory_space<vmem>>, vector<16x128xf32>
    %c0_2 = arith.constant 0 : index
    %c0_3 = arith.constant 0 : index
    %4 = vector.load %arg3[%c0_2, %c0_3] : memref<16x128xf32, #tpu.memory_space<vmem>>, vector<16x128xf32>
    %5 = math.log %3 : vector<16x128xf32>
    %6 = math.log %4 : vector<16x128xf32>
    %7 = arith.subf %5, %6 : vector<16x128xf32>
    %8 = arith.mulf %7, %7 : vector<16x128xf32>
    %c0_4 = arith.constant 0 : index
    %c0_5 = arith.constant 0 : index
    %9 = vector.load %arg5[%c0_4, %c0_5] : memref<16x128xf32, #tpu.memory_space<vmem>>, vector<16x128xf32>
    %10 = arith.addf %9, %8 : vector<16x128xf32>
    %c0_6 = arith.constant 0 : index
    %c0_7 = arith.constant 0 : index
    %11 = vector.load %arg5[%c0_6, %c0_7] : memref<16x128xf32, #tpu.memory_space<vmem>>, vector<16x128xf32>
    tpu.vector_store %arg5[%c0_6, %c0_7], %10 {strides = array<i32>} : memref<16x128xf32, #tpu.memory_space<vmem>>, vector<16x128xf32>,
    %c0_i32_8 = arith.constant 0 : i32
    %12 = arith.cmpi eq, %arg1, %c0_i32_8 : i32
    %13 = arith.extui %12 : i1 to i32
    %c0_i32_9 = arith.constant 0 : i32
    %14 = arith.cmpi ne, %13, %c0_i32_9 : i32
    scf.if %14 {
      %c0_10 = arith.constant 0 : index
      %c0_11 = arith.constant 0 : index
      %15 = vector.load %arg5[%c0_10, %c0_11] : memref<16x128xf32, #tpu.memory_space<vmem>>, vector<16x128xf32>
      %16 = vector.shape_cast %15 : vector<16x128xf32> to vector<1x16x128xf32>
      %cst = arith.constant dense<0.000000e+00> : vector<1xf32>
      %17 = vector.multi_reduction <add>, %16, %cst [1, 2] : vector<1x16x128xf32> to vector<1xf32>
      %18 = vector.shape_cast %17 : vector<1xf32> to vector<1x1x1xf32>
      %19 = vector.extract %18[0, 0, 0] : f32 from vector<1x1x1xf32>
      %c0_12 = arith.constant 0 : index
      %c0_13 = arith.constant 0 : index
      %20 = memref.load %arg4[%c0_12, %c0_13] : memref<1x1xf32, #tpu.memory_space<smem>>
      memref.store %19, %arg4[%c0_12, %c0_13] : memref<1x1xf32, #tpu.memory_space<smem>>
    } else {
    }
    return
  }
  func.func @transform_0(%arg0: i32, %arg1: i32) -> (i32, i32) {
    %c1_i32 = arith.constant 1 : i32
    %0 = arith.muli %arg0, %c1_i32 : i32
    %1 = arith.addi %0, %arg1 : i32
    %c0_i32 = arith.constant 0 : i32
    %c0_i32_0 = arith.constant 0 : i32
    return %1, %c0_i32 : i32, i32
  }
  func.func @transform_1(%arg0: i32, %arg1: i32) -> (i32, i32) {
    %c1_i32 = arith.constant 1 : i32
    %0 = arith.muli %arg0, %c1_i32 : i32
    %1 = arith.addi %0, %arg1 : i32
    %c0_i32 = arith.constant 0 : i32
    %c0_i32_0 = arith.constant 0 : i32
    return %1, %c0_i32 : i32, i32
  }
  func.func @transform_2(%arg0: i32, %arg1: i32) -> (i32, i32) {
    %c0_i32 = arith.constant 0 : i32
    %c0_i32_0 = arith.constant 0 : i32
    return %arg0, %c0_i32 : i32, i32
  }
}

</mosaic_0001>

<llo_original>
// kernel: tpu_custom_call.1
$region0: #{tpu_custom_call.1}
  #allocation0 [shape = 'u32[]', space=smem, size = 0x4, offset = 0x4, fixed_abs, tag = 'smem constant byte address 0x4 - core index']
  #allocation1 [shape = 'u32[144,128]{1,0:T(1,128)}', space=vmem, size = 0x12000, scoped, tag = 'internal scratch']
  #allocation2 [shape = 'f32[16,128]{1,0:T(8,128)}', space=vmem, size = 0x2000, scoped, tag = 'scratch operand']
  %s0 = inlined_call_operand.hbm [shape: f32[16,128], index: 0, kind: input, shape index: {}]
  %s1 = inlined_call_operand.hbm [shape: f32[16,128], index: 1, kind: input, shape index: {}]
  %s2 = inlined_call_operand.hbm [shape: f32[1,1], index: 2, kind: output, shape index: {}]
  %s3 = sld [smem:[#allocation0]]
  $region34: #{tpu_custom_call.1} parent=0
    _
  %s5 = ssub.s32 1, %s3
  %s6 = scalar_select 0, %s5, %s3
  $region1: #{tpu_custom_call.1} parent=0
    #allocation3 [shape = 'u8[8192]{0}', space=vmem, size = 0x2000, scoped, tag = 'input window, operand 0, single buffered']
    #allocation4 [shape = 's32[1]{0}', space=sflag, size = 0x4, scoped, tag = 'scoped memory for tpu_custom_call.1']
    #allocation5 [shape = 's32[1]{0}', space=sflag, size = 0x4, scoped, tag = 'scoped memory for tpu_custom_call.1']
    #allocation6 [shape = 'u8[8192]{0}', space=vmem, size = 0x2000, scoped, tag = 'input window, operand 1, single buffered']
    #allocation7 [shape = 's32[1]{0}', space=sflag, size = 0x4, scoped, tag = 'scoped memory for tpu_custom_call.1']
    #allocation8 [shape = 'u8[512]{0}', space=smem, size = 0x200, scoped, tag = 'output window, operand 0, single buffered']
    %7 = vsyncpa [#allocation4], 0
    %8 = vsyncpa [#allocation7], 0
    %9 = vsyncpa [#allocation5], 0
    // Predicated region
    $region2: #{tpu_custom_call.1} parent=1 // pred_check
      _
    $region3: #{tpu_custom_call.1} parent=1 // pred_check_branch
      %11 = sbr.rel (0) target = $region5
    $region4: #{tpu_custom_call.1} parent=1 // pred_region
      %s12 = sadd.s32 0, 0
      %s13 = smul.u32 2, %s12
      %s15 = ssub.s32 256, 256
      %16 = vsyncadd [#allocation4], %s15
      %s17 = smul.addr %s13, 128
      %s18 = scalar_lea.hbm %s0, %s17
      %s19 = sshll.u32 [#allocation3], 4
      %s20 = int_to_ptr.vmem [resolvable:$true] %s19
      %25 = dma.hbm_to_vmem [thread:$0]  %s18, 256, %s20, [#allocation4], 128, 128, 8
    $region5: #{tpu_custom_call.1} parent=1 // pred_fallthru
      _
    // Predicated region
    $region6: #{tpu_custom_call.1} parent=1 // pred_check
      _
    $region7: #{tpu_custom_call.1} parent=1 // pred_check_branch
      %27 = sbr.rel (0) target = $region9
    $region8: #{tpu_custom_call.1} parent=1 // pred_region
      %s28 = sadd.s32 0, 0
      %s29 = smul.u32 2, %s28
      %s31 = ssub.s32 256, 256
      %32 = vsyncadd [#allocation7], %s31
      %s33 = smul.addr %s29, 128
      %s34 = scalar_lea.hbm %s1, %s33
      %s35 = sshll.u32 [#allocation6], 4
      %s36 = int_to_ptr.vmem [resolvable:$true] %s35
      %41 = dma.hbm_to_vmem [thread:$0]  %s34, 256, %s36, [#allocation7], 128, 128, 8
    $region9: #{tpu_custom_call.1} parent=1 // pred_fallthru
      _
    // Predicated region
    $region10: #{tpu_custom_call.1} parent=1 // pred_check
      _
    $region11: #{tpu_custom_call.1} parent=1 // pred_check_branch
      %43 = sbr.rel (0) target = $region13
    $region12: #{tpu_custom_call.1} parent=1 // pred_region
      %44 = dma.done [#allocation4], 256
    $region13: #{tpu_custom_call.1} parent=1 // pred_fallthru
      _
    // Predicated region
    $region14: #{tpu_custom_call.1} parent=1 // pred_check
      _
    $region15: #{tpu_custom_call.1} parent=1 // pred_check_branch
      %46 = sbr.rel (0) target = $region17
    $region16: #{tpu_custom_call.1} parent=1 // pred_region
      %47 = dma.done [#allocation7], 256
    $region17: #{tpu_custom_call.1} parent=1 // pred_fallthru
      _
    %s48 = sadd.s32 0, 0
    %s49 = smul.u32 2, %s48
    %s50 = sadd.s32 0, 0
    %s51 = smul.u32 2, %s50
    %p52 = scmp.eq.s32.totalorder 0, 0
    // Predicated region
    $region18: #{tpu_custom_call.1} parent=1 // pred_check
      %p53 = pneg %p52
    $region19: #{tpu_custom_call.1} parent=1 // pred_check_branch
      %55 = sbr.rel (%p53) target = $region21
    $region20: #{tpu_custom_call.1} parent=1 // pred_region
      %56 = vst [vmem:[#allocation2] sm:$0xff] 0.0
      %57 = vst [vmem:[#allocation2 + $0x8] sm:$0xff] 0.0
    $region21: #{tpu_custom_call.1} parent=1 // pred_fallthru
      _
    %v58 = vld [vmem:[#allocation3] sm:$0xff]
    %v59 = vld [vmem:[#allocation3 + $0x8] sm:$0xff]
    %v60 = vld [vmem:[#allocation6] sm:$0xff]
    %v61 = vld [vmem:[#allocation6 + $0x8] sm:$0xff]
    %v62 = vlog2.pop %v58
    %v63 = vmul.f32 %v62, 0.6931472
    %v64 = vlog2.pop %v59
    %v65 = vmul.f32 %v64, 0.6931472
    %v66 = vlog2.pop %v60
    %v67 = vmul.f32 %v66, 0.6931472
    %v68 = vlog2.pop %v61
    %v69 = vmul.f32 %v68, 0.6931472
    %v70 = vsub.f32 %v63, %v67
    %v71 = vsub.f32 %v65, %v69
    %v72 = vmul.f32 %v70, %v70
    %v73 = vmul.f32 %v71, %v71
    %v74 = vld [vmem:[#allocation2] sm:$0xff]
    %v75 = vld [vmem:[#allocation2 + $0x8] sm:$0xff]
    %v76 = vadd.f32 %v74, %v72
    %v77 = vadd.f32 %v75, %v73
    %78 = vst [vmem:[#allocation2] sm:$0xff] %v76
    %79 = vst [vmem:[#allocation2 + $0x8] sm:$0xff] %v77
    // Predicated region
    $region22: #{tpu_custom_call.1} parent=1 // pred_check
      %p80 = pneg %p52
    $region23: #{tpu_custom_call.1} parent=1 // pred_check_branch
      %82 = sbr.rel (%p80) target = $region25
    $region24: #{tpu_custom_call.1} parent=1 // pred_region
      %v83 = vld [vmem:[#allocation2] sm:$0xff]
      %v84 = vld [vmem:[#allocation2 + $0x8] sm:$0xff]
      %v85 = vadd.f32 %v83, %v84
      %86 = vadd.xlane.f32.xlu0 %v85
      %v87 = vpop.xlane.xlu0 %86
      %v88 = vrot.slane %v87, 4
      %v89 = vadd.f32 %v87, %v88
      %v90 = vrot.slane %v89, 2
      %v91 = vadd.f32 %v89, %v90
      %v92 = vrot.slane %v91, 1
      %v93 = vadd.f32 %v91, %v92
      %s94 = vtos %v93
      %s95 = scalar_lea.smem [#allocation8], 0
      %96 = sst [smem:[%s95]] %s94
    $region25: #{tpu_custom_call.1} parent=1 // pred_fallthru
      _
    // Predicated region
    $region26: #{tpu_custom_call.1} parent=1 // pred_check
      _
    $region27: #{tpu_custom_call.1} parent=1 // pred_check_branch
      %98 = sbr.rel (0) target = $region29
    $region28: #{tpu_custom_call.1} parent=1 // pred_region
      %s100 = ssub.s32 16, 16
      %101 = vsyncadd [#allocation5], %s100
      %104 = dma.smem_to_hbm [#allocation8], 16, %s2, [#allocation5]
    $region29: #{tpu_custom_call.1} parent=1 // pred_fallthru
      _
    // Predicated region
    $region30: #{tpu_custom_call.1} parent=1 // pred_check
      _
    $region31: #{tpu_custom_call.1} parent=1 // pred_check_branch
      %106 = sbr.rel (0) target = $region33
    $region32: #{tpu_custom_call.1} parent=1 // pred_region
      %107 = dma.done [#allocation5], 16
    $region33: #{tpu_custom_call.1} parent=1 // pred_fallthru
      _
    %108 = sfence
    %109 = vsyncpa [#allocation4], 1
    %110 = vsyncpa [#allocation7], 1
    %111 = vsyncpa [#allocation5], 1

</llo_original>
